<compile_context>
chip_gen: v7x
topology: tpu7x:2x2x1
jax: 0.10.0
libtpu: 0.0.40
codegen_flags: <defaults>
</compile_context>

<pallas_src>
import jax
import jax.numpy as jnp
from jax.experimental import pallas as pl
from jax.experimental.pallas import tpu as pltpu


def _default_vmem_limit_bytes():
    """~75% of this chip's VMEM (<=100 MiB); falls back to a v7x-safe 48 MiB."""
    try:
        cap = int(pltpu.get_tpu_info().vmem_capacity_bytes)
    except Exception:
        cap = 64 * 1024 * 1024  # assume the most restrictive generation (v7x)
    return min(cap * 3 // 4, 100 * 1024 * 1024)


def _make_conv_kernel(Hh, OH, OW, C, build_once_per_image):
    m = OH * OW

    def kernel(x_ref, w_ref, b_ref, o_ref, patch_ref):
        # x_ref:     (1, 4*Hh, Wh, C)  space-to-depth phases of one padded image:
        #            x_ref[0, p*Hh + i, j, c] == x_pad[2*i + p//2, 2*j + p%2, c]
        # w_ref:     (9*C, tn)         weight tile, rows ordered (kh, kw, c)
        # b_ref:     (1, tn)           f32 bias tile
        # o_ref:     (1, OH*OW, tn)
        # patch_ref: (OH*OW, 9*C)      persistent VMEM patch scratch
        def build_patch():
            slabs = []
            for kh in range(3):
                for kw in range(3):
                    p = 2 * (kh % 2) + (kw % 2)       # stride-2 phase
                    dh, dw = kh // 2, kw // 2         # shift inside the phase grid
                    r0 = p * Hh + dh
                    slab = x_ref[0, r0:r0 + OH, dw:dw + OW, :].reshape(m, C)
                    t = 3 * kh + kw
                    if C % 128 == 0:                  # lane-aligned per-tap store
                        patch_ref[:, t * C:(t + 1) * C] = slab
                    else:                             # tiny C: one full aligned store
                        slabs.append(slab)
            if C % 128 != 0:
                patch_ref[...] = jnp.concatenate(slabs, axis=-1)

        if build_once_per_image:
            # Cout tiles are the inner ("arbitrary") axis: patch reused across them.
            @pl.when(pl.program_id(1) == 0)
            def _():
                build_patch()
        else:
            # image changes every step: rebuild (no carried state -> both axes parallel)
            build_patch()

        acc = jnp.dot(patch_ref[...], w_ref[...],
                      preferred_element_type=jnp.float32)
        o_ref[0] = (acc + b_ref[...]).astype(o_ref.dtype)

    return kernel


def downsample_conv2d(x, weight, bias, *, padding=1, tn=None,
                      compute_dtype=jnp.bfloat16,
                      in_layout="NCHW", out_layout="NCHW"):
    """3x3 / stride-2 / pad-1 conv (Downsample with use_conv=True, dims=2)."""
    if in_layout == "NCHW":
        N, C, H, W = x.shape
        x_nhwc = jnp.transpose(x, (0, 2, 3, 1))
    else:
        N, H, W, C = x.shape
        x_nhwc = x
    out_dtype = x.dtype
    Cout, Cin, KH, KW = weight.shape
    assert Cin == C and KH == 3 and KW == 3 and padding == 1
    stride = 2
    OH = (H + 2 * padding - KH) // stride + 1
    OW = (W + 2 * padding - KW) // stride + 1
    Hh, Wh = OH + 1, OW + 1              # stride-2 phase-grid extents
    Hp, Wp = 2 * Hh, 2 * Wh              # padded-to-even spatial extents

    compute_dtype = out_dtype if compute_dtype is None else compute_dtype

    # Output-channel tile: 256 fills the 2x256x256 MXU (v6e/v7x) unless it pads more
    # than 128 would (e.g. Cout=320). v5e callers can pass tn=128 explicitly.
    if tn is None:
        tn = 256 if pl.cdiv(Cout, 256) * 256 <= pl.cdiv(Cout, 128) * 128 else 128
    n_cout = pl.cdiv(Cout, tn)
    Cout_pad = n_cout * tn               # lane-dense output tiles

    # ---- layout glue: one fused cast + NHWC pad + space-to-depth pass (no im2col) ----
    xp = jnp.pad(x_nhwc.astype(compute_dtype),
                 ((0, 0), (padding, Hp - H - padding),
                  (padding, Wp - W - padding), (0, 0)))
    # phases[n, (2*ph+pw)*Hh + i, j, c] = x_pad[n, 2*i+ph, 2*j+pw, c]
    phases = (xp.reshape(N, Hh, 2, Wh, 2, C)
                .transpose(0, 2, 4, 1, 3, 5)
                .reshape(N, 4 * Hh, Wh, C))

    # weights: (Cout, C, 3, 3) -> (kh, kw, C, Cout) -> (9*C, Cout_pad); bias stays f32
    wmat = jnp.transpose(weight, (2, 3, 1, 0)).reshape(9 * C, Cout)
    wmat = jnp.pad(wmat, ((0, 0), (0, Cout_pad - Cout))).astype(compute_dtype)
    bmat = jnp.pad(bias.astype(jnp.float32), (0, Cout_pad - Cout)).reshape(1, Cout_pad)

    m = OH * OW
    itemsize = jnp.dtype(compute_dtype).itemsize
    phases_bytes = N * 4 * Hh * Wh * C * itemsize
    weight_bytes = 9 * C * Cout_pad * itemsize
    out_bytes = N * m * Cout_pad * jnp.dtype(out_dtype).itemsize
    vmem_limit = _default_vmem_limit_bytes()

    # Grid-order heuristic: the operand whose block index cycles on the inner axis is
    # re-fetched from HBM; keep that the cheaper of {all weights x (N-1), all phases
    # x (n_cout-1)}.  Tie-break to batch-outer (>=2 blocks on the leading "parallel"
    # axis keeps both v7x TensorCores busy and lets the patch be built once per image).
    extra_batch_outer = weight_bytes * (N - 1) if n_cout > 1 else 0
    extra_cout_outer = phases_bytes * (n_cout - 1) if N > 1 else 0
    if extra_batch_outer != extra_cout_outer:
        batch_outer = extra_batch_outer < extra_cout_outer
    else:
        batch_outer = N >= 2

    kernel = _make_conv_kernel(Hh, OH, OW, C, build_once_per_image=batch_outer)

    phase_block = (1, 4 * Hh, Wh, C)
    w_block = (9 * C, tn)

    if batch_outer:
        grid = (N, n_cout)
        dims = ("parallel", "arbitrary")   # inner Cout axis reuses the patch scratch
        phase_map = lambda n, j: (n, 0, 0, 0)
        w_map = lambda n, j: (0, j)
        b_map = lambda n, j: (0, j)
        o_map = lambda n, j: (n, 0, j)
        # weights cycle on the inner axis -> deepen their pipeline if cheap in VMEM
        w_mode = (pl.Buffered(3)
                  if n_cout >= 3 and 3 * 9 * C * tn * itemsize <= vmem_limit // 4
                  else None)
        p_mode = None
    else:
        grid = (n_cout, N)
        dims = ("parallel", "parallel")    # patch rebuilt every step: no carried state
        phase_map = lambda j, n: (n, 0, 0, 0)
        w_map = lambda j, n: (0, j)
        b_map = lambda j, n: (0, j)
        o_map = lambda j, n: (n, 0, j)
        per_image_bytes = 4 * Hh * Wh * C * itemsize
        p_mode = (pl.Buffered(3)
                  if N >= 3 and 3 * per_image_bytes <= vmem_limit // 4
                  else None)
        w_mode = None

    def spec(shape, imap, mode):
        if mode is None:
            return pl.BlockSpec(shape, imap)
        return pl.BlockSpec(shape, imap, pipeline_mode=mode)

    flops = 2 * N * m * 9 * C * Cout_pad
    if batch_outer:
        bytes_accessed = phases_bytes + weight_bytes * (N if n_cout > 1 else 1) + out_bytes
    else:
        bytes_accessed = phases_bytes * (n_cout if N > 1 else 1) + weight_bytes + out_bytes

    out = pl.pallas_call(
        kernel,
        out_shape=jax.ShapeDtypeStruct((N, m, Cout_pad), out_dtype),
        grid=grid,
        in_specs=[
            spec(phase_block, phase_map, p_mode),    # space-to-depth phases (one image)
            spec(w_block, w_map, w_mode),            # (9*C, tn) weight tile
            pl.BlockSpec((1, tn), b_map),            # f32 bias tile
        ],
        out_specs=pl.BlockSpec((1, m, tn), o_map),
        scratch_shapes=[pltpu.VMEM((m, 9 * C), compute_dtype)],   # persistent patch
        compiler_params=pltpu.CompilerParams(
            dimension_semantics=dims,
            vmem_limit_bytes=vmem_limit),
        cost_estimate=pl.CostEstimate(flops=int(flops), transcendentals=0,
                                      bytes_accessed=int(bytes_accessed)),
    )(phases, wmat, bmat)

    out = out[:, :, :Cout].reshape(N, OH, OW, Cout)
    if out_layout == "NCHW":
        out = jnp.transpose(out, (0, 3, 1, 2))       # match PyTorch NCHW
    return out


if __name__ == "__main__":
    # Downsample(channels=4, use_conv=True, dims=2) -> Conv2d(4, 4, 3, stride=2, padding=1)
    N, C, H, W = 2, 4, 16, 16
    Cout = C

    key = jax.random.PRNGKey(0)
    kx, kw, kb = jax.random.split(key, 3)
    x = jax.random.normal(kx, (N, C, H, W), dtype=jnp.float32)
    fan_in = C * 3 * 3
    bound = 1.0 / (fan_in ** 0.5)
    weight = jax.random.uniform(kw, (Cout, C, 3, 3), dtype=jnp.float32,
                                minval=-bound, maxval=bound)
    bias = jax.random.uniform(kb, (Cout,), dtype=jnp.float32,
                              minval=-bound, maxval=bound)

    # reference (same semantics as torch Conv2d(3, stride=2, padding=1))
    ref = jax.lax.conv_general_dilated(
        x, weight, window_strides=(2, 2), padding=((1, 1), (1, 1)),
        dimension_numbers=("NCHW", "OIHW", "NCHW")) + bias.reshape(1, -1, 1, 1)

    # exactness check with f32 operands
    y32 = jax.block_until_ready(
        jax.jit(lambda a, b, c: downsample_conv2d(
            a, b, c, compute_dtype=jnp.float32))(x, weight, bias))
    assert y32.shape == (N, Cout, H // 2, W // 2)
    assert jnp.allclose(y32, ref, atol=1e-4, rtol=1e-4)

    # production path: bf16 MXU operands, f32 accumulation (looser tolerance expected)
    y16 = jax.block_until_ready(
        jax.jit(lambda a, b, c: downsample_conv2d(a, b, c))(x, weight, bias))
    assert y16.shape == (N, Cout, H // 2, W // 2)
    assert jnp.allclose(y16, ref, atol=5e-2, rtol=5e-2)

    print("KERNEL_OK")
</pallas_src>

<mosaic_0001>
module attributes {stable_mosaic.version = 11 : i64} {
  func.func @kernel(%arg0: i32, %arg1: i32, %arg2: memref<1x36x9x4xf32, #tpu.memory_space<vmem>>, %arg3: memref<36x128xf32, #tpu.memory_space<vmem>>, %arg4: memref<1x128xf32, #tpu.memory_space<vmem>>, %arg5: memref<1x64x128xf32, #tpu.memory_space<vmem>>, %arg6: memref<64x36xf32, #tpu.memory_space<vmem>>) attributes {dimension_semantics = [#tpu.dimension_semantics<parallel>, #tpu.dimension_semantics<arbitrary>], iteration_bounds = array<i64: 2, 1>, scalar_prefetch = 0 : i64, scratch_operands = 1 : i64, tpu.core_type = #tpu.core_type<tc>, window_params = [{transform_indices = @transform_0, window_bounds = array<i64: 1, 36, 9, 4>}, {transform_indices = @transform_1, window_bounds = array<i64: 36, 128>}, {transform_indices = @transform_2, window_bounds = array<i64: 1, 128>}, {transform_indices = @transform_3, window_bounds = array<i64: 1, 64, 128>}]} {
    %c0_i32 = arith.constant 0 : i32
    %0 = arith.cmpi eq, %arg1, %c0_i32 : i32
    %1 = arith.extui %0 : i1 to i32
    %c0_i32_0 = arith.constant 0 : i32
    %2 = arith.cmpi ne, %1, %c0_i32_0 : i32
    scf.if %2 {
      %c0_9 = arith.constant 0 : index
      %c0_10 = arith.constant 0 : index
      %c0_11 = arith.constant 0 : index
      %c0_12 = arith.constant 0 : index
      %12 = vector.load %arg2[%c0_9, %c0_10, %c0_11, %c0_12] : memref<1x36x9x4xf32, #tpu.memory_space<vmem>>, vector<1x8x8x4xf32>
      %13 = vector.shape_cast %12 : vector<1x8x8x4xf32> to vector<8x8x4xf32>
      %14 = vector.shape_cast %13 : vector<8x8x4xf32> to vector<64x4xf32>
      %c0_13 = arith.constant 0 : index
      %c9 = arith.constant 9 : index
      %c0_14 = arith.constant 0 : index
      %c0_15 = arith.constant 0 : index
      %15 = vector.load %arg2[%c0_13, %c9, %c0_14, %c0_15] : memref<1x36x9x4xf32, #tpu.memory_space<vmem>>, vector<1x8x8x4xf32>
      %16 = vector.shape_cast %15 : vector<1x8x8x4xf32> to vector<8x8x4xf32>
      %17 = vector.shape_cast %16 : vector<8x8x4xf32> to vector<64x4xf32>
      %c0_16 = arith.constant 0 : index
      %c0_17 = arith.constant 0 : index
      %c1 = arith.constant 1 : index
      %c0_18 = arith.constant 0 : index
      %18 = vector.load %arg2[%c0_16, %c0_17, %c1, %c0_18] : memref<1x36x9x4xf32, #tpu.memory_space<vmem>>, vector<1x8x8x4xf32>
      %19 = vector.shape_cast %18 : vector<1x8x8x4xf32> to vector<8x8x4xf32>
      %20 = vector.shape_cast %19 : vector<8x8x4xf32> to vector<64x4xf32>
      %c0_19 = arith.constant 0 : index
      %c18 = arith.constant 18 : index
      %c0_20 = arith.constant 0 : index
      %c0_21 = arith.constant 0 : index
      %21 = vector.load %arg2[%c0_19, %c18, %c0_20, %c0_21] : memref<1x36x9x4xf32, #tpu.memory_space<vmem>>, vector<1x8x8x4xf32>
      %22 = vector.shape_cast %21 : vector<1x8x8x4xf32> to vector<8x8x4xf32>
      %23 = vector.shape_cast %22 : vector<8x8x4xf32> to vector<64x4xf32>
      %c0_22 = arith.constant 0 : index
      %c27 = arith.constant 27 : index
      %c0_23 = arith.constant 0 : index
      %c0_24 = arith.constant 0 : index
      %24 = vector.load %arg2[%c0_22, %c27, %c0_23, %c0_24] : memref<1x36x9x4xf32, #tpu.memory_space<vmem>>, vector<1x8x8x4xf32>
      %25 = vector.shape_cast %24 : vector<1x8x8x4xf32> to vector<8x8x4xf32>
      %26 = vector.shape_cast %25 : vector<8x8x4xf32> to vector<64x4xf32>
      %c0_25 = arith.constant 0 : index
      %c18_26 = arith.constant 18 : index
      %c1_27 = arith.constant 1 : index
      %c0_28 = arith.constant 0 : index
      %27 = vector.load %arg2[%c0_25, %c18_26, %c1_27, %c0_28] : memref<1x36x9x4xf32, #tpu.memory_space<vmem>>, vector<1x8x8x4xf32>
      %28 = vector.shape_cast %27 : vector<1x8x8x4xf32> to vector<8x8x4xf32>
      %29 = vector.shape_cast %28 : vector<8x8x4xf32> to vector<64x4xf32>
      %c0_29 = arith.constant 0 : index
      %c1_30 = arith.constant 1 : index
      %c0_31 = arith.constant 0 : index
      %c0_32 = arith.constant 0 : index
      %30 = vector.load %arg2[%c0_29, %c1_30, %c0_31, %c0_32] : memref<1x36x9x4xf32, #tpu.memory_space<vmem>>, vector<1x8x8x4xf32>
      %31 = vector.shape_cast %30 : vector<1x8x8x4xf32> to vector<8x8x4xf32>
      %32 = vector.shape_cast %31 : vector<8x8x4xf32> to vector<64x4xf32>
      %c0_33 = arith.constant 0 : index
      %c10 = arith.constant 10 : index
      %c0_34 = arith.constant 0 : index
      %c0_35 = arith.constant 0 : index
      %33 = vector.load %arg2[%c0_33, %c10, %c0_34, %c0_35] : memref<1x36x9x4xf32, #tpu.memory_space<vmem>>, vector<1x8x8x4xf32>
      %34 = vector.shape_cast %33 : vector<1x8x8x4xf32> to vector<8x8x4xf32>
      %35 = vector.shape_cast %34 : vector<8x8x4xf32> to vector<64x4xf32>
      %c0_36 = arith.constant 0 : index
      %c1_37 = arith.constant 1 : index
      %c1_38 = arith.constant 1 : index
      %c0_39 = arith.constant 0 : index
      %36 = vector.load %arg2[%c0_36, %c1_37, %c1_38, %c0_39] : memref<1x36x9x4xf32, #tpu.memory_space<vmem>>, vector<1x8x8x4xf32>
      %37 = vector.shape_cast %36 : vector<1x8x8x4xf32> to vector<8x8x4xf32>
      %38 = vector.shape_cast %37 : vector<8x8x4xf32> to vector<64x4xf32>
      %39 = tpu.concatenate %14, %17, %20, %23, %26, %29, %32, %35, %38 in 1 : vector<64x4xf32>, vector<64x4xf32>, vector<64x4xf32>, vector<64x4xf32>, vector<64x4xf32>, vector<64x4xf32>, vector<64x4xf32>, vector<64x4xf32>, vector<64x4xf32> -> vector<64x36xf32>
      %c0_40 = arith.constant 0 : index
      %c0_41 = arith.constant 0 : index
      %40 = vector.load %arg6[%c0_40, %c0_41] : memref<64x36xf32, #tpu.memory_space<vmem>>, vector<64x36xf32>
      tpu.vector_store %arg6[%c0_40, %c0_41], %39 {strides = array<i32>} : memref<64x36xf32, #tpu.memory_space<vmem>>, vector<64x36xf32>,
    } else {
    }
    %c0 = arith.constant 0 : index
    %c0_1 = arith.constant 0 : index
    %3 = vector.load %arg6[%c0, %c0_1] : memref<64x36xf32, #tpu.memory_space<vmem>>, vector<64x36xf32>
    %c0_2 = arith.constant 0 : index
    %c0_3 = arith.constant 0 : index
    %4 = vector.load %arg3[%c0_2, %c0_3] : memref<36x128xf32, #tpu.memory_space<vmem>>, vector<36x128xf32>
    %cst = arith.constant dense<0.000000e+00> : vector<64x128xf32>
    %5 = tpu.matmul %3, %4, %cst {dimension_numbers = #tpu.dot_dimension_numbers<[1], [0], [0], [1], [0, 0, 1, 1], [], []>} : vector<64x36xf32>, vector<36x128xf32>, vector<64x128xf32> -> vector<64x128xf32>
    %c0_4 = arith.constant 0 : index
    %c0_5 = arith.constant 0 : index
    %6 = vector.load %arg4[%c0_4, %c0_5] : memref<1x128xf32, #tpu.memory_space<vmem>>, vector<1x128xf32>
    %7 = vector.broadcast %6 : vector<1x128xf32> to vector<64x128xf32>
    %8 = arith.addf %5, %7 : vector<64x128xf32>
    %c0_6 = arith.constant 0 : index
    %c0_7 = arith.constant 0 : index
    %c0_8 = arith.constant 0 : index
    %9 = vector.load %arg5[%c0_6, %c0_7, %c0_8] : memref<1x64x128xf32, #tpu.memory_space<vmem>>, vector<1x64x128xf32>
    %10 = vector.shape_cast %9 : vector<1x64x128xf32> to vector<64x128xf32>
    %11 = vector.shape_cast %8 : vector<64x128xf32> to vector<1x64x128xf32>
    tpu.vector_store %arg5[%c0_6, %c0_7, %c0_8], %11 {strides = array<i32>} : memref<1x64x128xf32, #tpu.memory_space<vmem>>, vector<1x64x128xf32>,
    return
  }
  func.func @transform_0(%arg0: i32, %arg1: i32) -> (i32, i32, i32, i32) {
    %c0_i32 = arith.constant 0 : i32
    %c0_i32_0 = arith.constant 0 : i32
    %c0_i32_1 = arith.constant 0 : i32
    %c0_i32_2 = arith.constant 0 : i32
    return %arg0, %c0_i32, %c0_i32_0, %c0_i32_1 : i32, i32, i32, i32
  }
  func.func @transform_1(%arg0: i32, %arg1: i32) -> (i32, i32) {
    %c0_i32 = arith.constant 0 : i32
    %c0_i32_0 = arith.constant 0 : i32
    return %c0_i32, %arg1 : i32, i32
  }
  func.func @transform_2(%arg0: i32, %arg1: i32) -> (i32, i32) {
    %c0_i32 = arith.constant 0 : i32
    %c0_i32_0 = arith.constant 0 : i32
    return %c0_i32, %arg1 : i32, i32
  }
  func.func @transform_3(%arg0: i32, %arg1: i32) -> (i32, i32, i32) {
    %c0_i32 = arith.constant 0 : i32
    %c0_i32_0 = arith.constant 0 : i32
    return %arg0, %c0_i32, %arg1 : i32, i32, i32
  }
}

</mosaic_0001>

<llo_original>
// kernel: _lambda_.1
$region0: #{_lambda_.1}
  #allocation0 [shape = 'u32[]', space=smem, size = 0x4, offset = 0x4, fixed_abs, tag = 'smem constant byte address 0x4 - core index']
  #allocation1 [shape = 'u32[144,128]{1,0:T(1,128)}', space=vmem, size = 0x12000, scoped, tag = 'internal scratch']
  #allocation2 [shape = 'f32[64,36]{1,0:T(8,128)}', space=vmem, size = 0x8000, scoped, tag = 'scratch operand']
  %s0 = inlined_call_operand.vmem [shape: f32[2,36,9,4], index: 0, kind: input, shape index: {}]
  %s1 = inlined_call_operand.vmem [shape: f32[36,128], index: 1, kind: input, shape index: {}]
  %s2 = inlined_call_operand.vmem [shape: f32[1,128], index: 2, kind: input, shape index: {}]
  %s3 = inlined_call_operand.vmem [shape: f32[2,64,128], index: 3, kind: output, shape index: {}]
  %s4 = sld [smem:[#allocation0]]
  $region49: #{_lambda_.1} parent=0
    _
  %s6 = ssub.s32 1, %s4
  %s7 = scalar_select 0, %s6, %s4
  loop: start=0, step=1, limit=4
  $region2: #{_lambda_.1} parent=0 // loop_pre_header
    _
  $region3: #{_lambda_.1} parent=0 // loop_header
    %s9 = sphi 0, %s13
    %p10 = scmp.ge.s32.totalorder %s9, 4
    %s16 = sphi 0, %s28
    %s17 = sphi 0, %s24
    %s18 = sphi 0, %s16
    %s19 = sphi 0, %s17
    %s20 = sphi 0, %s18
    %s21 = sphi 0, %s19
    %s31 = sphi 0, %s33
    %s34 = sphi 0, %s31
    %s35 = sphi 0, %s34
    %s51 = sphi 0, %s35
    %s57 = sphi 0, %s59
    %s60 = sphi 0, %s57
    %s61 = sphi 0, %s60
    %s77 = sphi 0, %s61
    %s83 = sphi 0, %s85
    %s86 = sphi 0, %s83
    %s87 = sphi 0, %s86
    %s103 = sphi 0, %s87
    %s111 = sphi 0, %s113
    %s114 = sphi 0, %s111
    %s115 = sphi 0, %s114
    %s131 = sphi 0, %s115
  $region4: #{_lambda_.1} parent=0 // loop_header_branch
    %12 = sbr.rel (%p10) target = $region8
  $region5: #{_lambda_.1} parent=0 // loop_body
    %s14 = ssub.s32 %s9, 1
    %s15 = ssub.s32 %s9, 2
    %s22 = sadd.s32 1, %s17
    %p23 = scmp.ge.s32.totalorder %s22, 1
    %s24 = scalar_select %p23, 0, %s22
    %s25 = sadd.s32 1, %s16
    %s26 = scalar_select %p23, %s25, %s16
    %p27 = scmp.ge.s32.totalorder %s26, 2
    %s28 = scalar_select %p27, 0, %s26
    %s29 = ssub.s32 %s16, %s28
    %p30 = scmp.eq.s32.totalorder %s29, 0
    %s32 = sadd.s32 %s31, 1
    %s33 = scalar_select %p30, %s31, %s32
    %p36 = pneg %p30
    %p37 = scmp.eq.s32.totalorder %s9, 1
    %p38 = por %p36, %p37
    %p39 = scmp.ne.s32.totalorder %s31, %s34
    %p40 = scmp.eq.s32.totalorder %s9, 0
    %p41 = por %p39, %p40
    %p42 = scmp.ne.s32.totalorder %s31, %s34
    %p43 = scmp.eq.s32.totalorder %s14, 1
    %p44 = por %p42, %p43
    %p45 = scmp.ne.s32.totalorder %s34, %s35
    %p46 = scmp.eq.s32.totalorder %s14, 0
    %p47 = por %p45, %p46
    %p48 = scmp.ne.s32.totalorder %s34, %s35
    %p49 = scmp.eq.s32.totalorder %s15, 1
    %p50 = por %p48, %p49
    %p52 = scmp.ne.s32.totalorder %s35, %s51
    %p53 = scmp.eq.s32.totalorder %s15, 0
    %p54 = por %p52, %p53
    %s55 = ssub.s32 %s17, %s24
    %p56 = scmp.eq.s32.totalorder %s55, 0
    %s58 = sadd.s32 %s57, 1
    %s59 = scalar_select %p56, %s57, %s58
    %p62 = pneg %p56
    %p63 = scmp.eq.s32.totalorder %s9, 1
    %p64 = por %p62, %p63
    %p65 = scmp.ne.s32.totalorder %s57, %s60
    %p66 = scmp.eq.s32.totalorder %s9, 0
    %p67 = por %p65, %p66
    %p68 = scmp.ne.s32.totalorder %s57, %s60
    %p69 = scmp.eq.s32.totalorder %s14, 1
    %p70 = por %p68, %p69
    %p71 = scmp.ne.s32.totalorder %s60, %s61
    %p72 = scmp.eq.s32.totalorder %s14, 0
    %p73 = por %p71, %p72
    %p74 = scmp.ne.s32.totalorder %s60, %s61
    %p75 = scmp.eq.s32.totalorder %s15, 1
    %p76 = por %p74, %p75
    %p78 = scmp.ne.s32.totalorder %s61, %s77
    %p79 = scmp.eq.s32.totalorder %s15, 0
    %p80 = por %p78, %p79
    %s81 = ssub.s32 %s17, %s24
    %p82 = scmp.eq.s32.totalorder %s81, 0
    %s84 = sadd.s32 %s83, 1
    %s85 = scalar_select %p82, %s83, %s84
    %p88 = pneg %p82
    %p89 = scmp.eq.s32.totalorder %s9, 1
    %p90 = por %p88, %p89
    %p91 = scmp.ne.s32.totalorder %s83, %s86
    %p92 = scmp.eq.s32.totalorder %s9, 0
    %p93 = por %p91, %p92
    %p94 = scmp.ne.s32.totalorder %s83, %s86
    %p95 = scmp.eq.s32.totalorder %s14, 1
    %p96 = por %p94, %p95
    %p97 = scmp.ne.s32.totalorder %s86, %s87
    %p98 = scmp.eq.s32.totalorder %s14, 0
    %p99 = por %p97, %p98
    %p100 = scmp.ne.s32.totalorder %s86, %s87
    %p101 = scmp.eq.s32.totalorder %s15, 1
    %p102 = por %p100, %p101
    %p104 = scmp.ne.s32.totalorder %s87, %s103
    %p105 = scmp.eq.s32.totalorder %s15, 0
    %p106 = por %p104, %p105
    %s107 = ssub.s32 %s16, %s28
    %s108 = ssub.s32 %s17, %s24
    %s109 = sor.u32 %s107, %s108
    %p110 = scmp.eq.s32.totalorder %s109, 0
    %s112 = sadd.s32 %s111, 1
    %s113 = scalar_select %p110, %s111, %s112
    %p116 = pneg %p110
    %p117 = scmp.eq.s32.totalorder %s9, 1
    %p118 = por %p116, %p117
    %p119 = scmp.ne.s32.totalorder %s111, %s114
    %p120 = scmp.eq.s32.totalorder %s9, 0
    %p121 = por %p119, %p120
    %p122 = scmp.ne.s32.totalorder %s111, %s114
    %p123 = scmp.eq.s32.totalorder %s14, 1
    %p124 = por %p122, %p123
    %p125 = scmp.ne.s32.totalorder %s114, %s115
    %p126 = scmp.eq.s32.totalorder %s14, 0
    %p127 = por %p125, %p126
    %p128 = scmp.ne.s32.totalorder %s114, %s115
    %p129 = scmp.eq.s32.totalorder %s15, 1
    %p130 = por %p128, %p129
    %p132 = scmp.ne.s32.totalorder %s115, %s131
    %p133 = scmp.eq.s32.totalorder %s15, 0
    %p134 = por %p132, %p133
    %p135 = scmp.le.s32.totalorder 1, %s9
    %p136 = scmp.lt.s32.totalorder %s9, 3
    %p137 = pnand %p135, %p136
    %p138 = pneg %p137
    // Predicated region
    $region9: #{_lambda_.1} parent=5 // pred_check
      _
    $region10: #{_lambda_.1} parent=5 // pred_check_branch
      %140 = sbr.rel (%p137) target = $region12
    $region11: #{_lambda_.1} parent=5 // pred_region
      %s141 = ssub.s32 %s9, 1
      // Predicated region
      $region13: #{_lambda_.1} parent=11 // pred_check
        %p142 = pneg %p73
      $region14: #{_lambda_.1} parent=11 // pred_check_branch
        %144 = sbr.rel (%p142) target = $region16
      $region15: #{_lambda_.1} parent=11 // pred_region
        %p145 = scmp.lt.s32.totalorder %s19, 0
        %s146 = scalar_select %p145, %s19, 0
        %s147 = smul.addr %s146, 8
        %s148 = scalar_lea.vmem %s1, %s147
      $region16: #{_lambda_.1} parent=11 // pred_fallthru
        _
      // Predicated region
      $region17: #{_lambda_.1} parent=11 // pred_check
        %p149 = pneg %p99
      $region18: #{_lambda_.1} parent=11 // pred_check_branch
        %151 = sbr.rel (%p149) target = $region20
      $region19: #{_lambda_.1} parent=11 // pred_region
        %p152 = scmp.lt.s32.totalorder %s19, 0
        %s153 = scalar_select %p152, %s19, 0
        %s154 = scalar_lea.vmem %s2, %s153
      $region20: #{_lambda_.1} parent=11 // pred_fallthru
        _
    $region12: #{_lambda_.1} parent=5 // pred_fallthru
      _
    %p155 = scmp.lt.s32.totalorder %s9, 2
    // Predicated region
    $region21: #{_lambda_.1} parent=5 // pred_check
      %p156 = pneg %p155
    $region22: #{_lambda_.1} parent=5 // pred_check_branch
      %158 = sbr.rel (%p156) target = $region24
    $region23: #{_lambda_.1} parent=5 // pred_region
      // Predicated region
      $region25: #{_lambda_.1} parent=23 // pred_check
        %p159 = pneg %p41
      $region26: #{_lambda_.1} parent=23 // pred_check_branch
        %161 = sbr.rel (%p159) target = $region28
      $region27: #{_lambda_.1} parent=23 // pred_region
        %p162 = scmp.lt.s32.totalorder %s16, 1
        %s163 = scalar_select %p162, %s16, 1
        %s164 = smul.addr %s163, 72
        %s165 = smul.addr %s164, 8
        %s166 = scalar_lea.vmem %s0, %s165
      $region28: #{_lambda_.1} parent=23 // pred_fallthru
        _
    $region24: #{_lambda_.1} parent=5 // pred_fallthru
      _
    %p167 = scmp.le.s32.totalorder 1, %s9
    %p168 = scmp.lt.s32.totalorder %s9, 3
    %p169 = pnand %p167, %p168
    %p170 = pneg %p169
    // Predicated region
    $region29: #{_lambda_.1} parent=5 // pred_check
      _
    $region30: #{_lambda_.1} parent=5 // pred_check_branch
      %172 = sbr.rel (%p169) target = $region32
    $region31: #{_lambda_.1} parent=5 // pred_region
      %s173 = ssub.s32 %s9, 1
      %p174 = scmp.lt.s32.totalorder %s18, 1
      %s175 = scalar_select %p174, %s18, 1
      %s176 = smul.addr %s175, 72
      %s177 = smul.addr %s176, 8
      %s178 = scalar_lea.vmem %s0, %s177
      %p179 = pneg %p47
      %p180 = pneg %p44
      %p181 = scmp.lt.s32.totalorder %s19, 0
      %s182 = scalar_select %p181, %s19, 0
      %s183 = smul.addr %s182, 8
      %s184 = scalar_lea.vmem %s1, %s183
      %p185 = pneg %p73
      %p186 = pneg %p70
      %p187 = scmp.lt.s32.totalorder %s19, 0
      %s188 = scalar_select %p187, %s19, 0
      %s189 = scalar_lea.vmem %s2, %s188
      %p190 = pneg %p99
      %p191 = pneg %p96
      %p192 = pneg %p127
      %p193 = pneg %p124
      %p194 = scmp.lt.s32.totalorder %s18, 1
      %s195 = scalar_select %p194, %s18, 1
      %p196 = scmp.lt.s32.totalorder %s19, 0
      %s197 = scalar_select %p196, %s19, 0
      %s198 = smul.addr %s195, 8
      %s199 = sadd.s32 %s197, %s198
      %s200 = smul.addr %s199, 8
      %s201 = scalar_lea.vmem %s3, %s200
      %p202 = scmp.lt.s32.totalorder %s18, 1
      %s203 = scalar_select %p202, %s18, 1
      %s204 = smul.addr %s203, 72
      %s205 = smul.addr %s204, 8
      %s206 = scalar_lea.vmem %s0, %s205
      %p207 = scmp.lt.s32.totalorder %s19, 0
      %s208 = scalar_select %p207, %s19, 0
      %s209 = smul.addr %s208, 8
      %s210 = scalar_lea.vmem %s1, %s209
      %p211 = scmp.lt.s32.totalorder %s19, 0
      %s212 = scalar_select %p211, %s19, 0
      %s213 = scalar_lea.vmem %s2, %s212
      %p214 = scmp.lt.s32.totalorder %s18, 1
      %s215 = scalar_select %p214, %s18, 1
      %p216 = scmp.lt.s32.totalorder %s19, 0
      %s217 = scalar_select %p216, %s19, 0
      %s218 = smul.addr %s215, 8
      %s219 = sadd.s32 %s217, %s218
      %s220 = smul.addr %s219, 8
      %s221 = scalar_lea.vmem %s3, %s220
      %p222 = scmp.eq.s32.totalorder %s19, 0
      // Predicated region
      $region33: #{_lambda_.1} parent=31 // pred_check
        %p223 = pneg %p222
      $region34: #{_lambda_.1} parent=31 // pred_check_branch
        %225 = sbr.rel (%p223) target = $region36
      $region35: #{_lambda_.1} parent=31 // pred_region
        %v226 = vld [vmem:[%s206] sm:$0xff]
        %v227 = vld [vmem:[%s206 + $0x10] sm:$0xff]
        %v228 = vld [vmem:[%s206 + $0x20] sm:$0xff]
        %v229 = vld [vmem:[%s206 + $0x30] sm:$0xff]
        %v230 = vld [vmem:[%s206 + $0x40] sm:$0xff]
        %v231 = vld [vmem:[%s206 + $0x50] sm:$0xff]
        %v232 = vld [vmem:[%s206 + $0x60] sm:$0xff]
        %v233 = vld [vmem:[%s206 + $0x70] sm:$0xff]
        %s234 = scalar_lea.vmem %s206, 144
        %v235 = vld [vmem:[%s234] sm:$0xff]
        %v236 = vld [vmem:[%s234 + $0x10] sm:$0xff]
        %v237 = vld [vmem:[%s234 + $0x20] sm:$0xff]
        %v238 = vld [vmem:[%s234 + $0x30] sm:$0xff]
        %v239 = vld [vmem:[%s234 + $0x40] sm:$0xff]
        %v240 = vld [vmem:[%s234 + $0x50] sm:$0xff]
        %v241 = vld [vmem:[%s234 + $0x60] sm:$0xff]
        %v242 = vld [vmem:[%s234 + $0x70] sm:$0xff]
        %v243 = vld [vmem:[%s206 + $0x1] sm:$0xff]
        %v244 = vld [vmem:[%s206 + $0x11] sm:$0xff]
        %v245 = vld [vmem:[%s206 + $0x21] sm:$0xff]
        %v246 = vld [vmem:[%s206 + $0x31] sm:$0xff]
        %v247 = vld [vmem:[%s206 + $0x41] sm:$0xff]
        %v248 = vld [vmem:[%s206 + $0x51] sm:$0xff]
        %v249 = vld [vmem:[%s206 + $0x61] sm:$0xff]
        %v250 = vld [vmem:[%s206 + $0x71] sm:$0xff]
        %s251 = scalar_lea.vmem %s206, 288
        %v252 = vld [vmem:[%s251] sm:$0xff]
        %v253 = vld [vmem:[%s251 + $0x10] sm:$0xff]
        %v254 = vld [vmem:[%s251 + $0x20] sm:$0xff]
        %v255 = vld [vmem:[%s251 + $0x30] sm:$0xff]
        %v256 = vld [vmem:[%s251 + $0x40] sm:$0xff]
        %v257 = vld [vmem:[%s251 + $0x50] sm:$0xff]
        %v258 = vld [vmem:[%s251 + $0x60] sm:$0xff]
        %v259 = vld [vmem:[%s251 + $0x70] sm:$0xff]
        %s260 = scalar_lea.vmem %s206, 432
        %v261 = vld [vmem:[%s260] sm:$0xff]
        %v262 = vld [vmem:[%s260 + $0x10] sm:$0xff]
        %v263 = vld [vmem:[%s260 + $0x20] sm:$0xff]
        %v264 = vld [vmem:[%s260 + $0x30] sm:$0xff]
        %v265 = vld [vmem:[%s260 + $0x40] sm:$0xff]
        %v266 = vld [vmem:[%s260 + $0x50] sm:$0xff]
        %v267 = vld [vmem:[%s260 + $0x60] sm:$0xff]
        %v268 = vld [vmem:[%s260 + $0x70] sm:$0xff]
        %v269 = vld [vmem:[%s251 + $0x1] sm:$0xff]
        %v270 = vld [vmem:[%s251 + $0x11] sm:$0xff]
        %v271 = vld [vmem:[%s251 + $0x21] sm:$0xff]
        %v272 = vld [vmem:[%s251 + $0x31] sm:$0xff]
        %v273 = vld [vmem:[%s251 + $0x41] sm:$0xff]
        %v274 = vld [vmem:[%s251 + $0x51] sm:$0xff]
        %v275 = vld [vmem:[%s251 + $0x61] sm:$0xff]
        %v276 = vld [vmem:[%s251 + $0x71] sm:$0xff]
        %s277 = scalar_lea.vmem %s206, 16
        %v278 = vld [vmem:[%s277] sm:$0xff]
        %v279 = vld [vmem:[%s277 + $0x10] sm:$0xff]
        %v280 = vld [vmem:[%s277 + $0x20] sm:$0xff]
        %v281 = vld [vmem:[%s277 + $0x30] sm:$0xff]
        %v282 = vld [vmem:[%s277 + $0x40] sm:$0xff]
        %v283 = vld [vmem:[%s277 + $0x50] sm:$0xff]
        %v284 = vld [vmem:[%s277 + $0x60] sm:$0xff]
        %v285 = vld [vmem:[%s277 + $0x70] sm:$0xff]
        %s286 = scalar_lea.vmem %s206, 160
        %v287 = vld [vmem:[%s286] sm:$0xff]
        %v288 = vld [vmem:[%s286 + $0x10] sm:$0xff]
        %v289 = vld [vmem:[%s286 + $0x20] sm:$0xff]
        %v290 = vld [vmem:[%s286 + $0x30] sm:$0xff]
        %v291 = vld [vmem:[%s286 + $0x40] sm:$0xff]
        %v292 = vld [vmem:[%s286 + $0x50] sm:$0xff]
        %v293 = vld [vmem:[%s286 + $0x60] sm:$0xff]
        %v294 = vld [vmem:[%s286 + $0x70] sm:$0xff]
        %v295 = vld [vmem:[%s277 + $0x1] sm:$0xff]
        %v296 = vld [vmem:[%s277 + $0x11] sm:$0xff]
        %v297 = vld [vmem:[%s277 + $0x21] sm:$0xff]
        %v298 = vld [vmem:[%s277 + $0x31] sm:$0xff]
        %v299 = vld [vmem:[%s277 + $0x41] sm:$0xff]
        %v300 = vld [vmem:[%s277 + $0x51] sm:$0xff]
        %v301 = vld [vmem:[%s277 + $0x61] sm:$0xff]
        %v302 = vld [vmem:[%s277 + $0x71] sm:$0xff]
        %311 = vrot.lane.b32.xlu0 %v235, 4
        %v312 = vpop.permute.xlu0 %311
        %313 = vrot.lane.b32.xlu0 %v236, 4
        %v314 = vpop.permute.xlu0 %313
        %315 = vrot.lane.b32.xlu0 %v237, 4
        %v316 = vpop.permute.xlu0 %315
        %317 = vrot.lane.b32.xlu0 %v238, 4
        %v318 = vpop.permute.xlu0 %317
        %319 = vrot.lane.b32.xlu0 %v239, 4
        %v320 = vpop.permute.xlu0 %319
        %321 = vrot.lane.b32.xlu0 %v240, 4
        %v322 = vpop.permute.xlu0 %321
        %323 = vrot.lane.b32.xlu0 %v241, 4
        %v324 = vpop.permute.xlu0 %323
        %325 = vrot.lane.b32.xlu0 %v242, 4
        %v326 = vpop.permute.xlu0 %325
        %343 = vrot.lane.b32.xlu0 %v243, 8
        %v344 = vpop.permute.xlu0 %343
        %345 = vrot.lane.b32.xlu0 %v244, 8
        %v346 = vpop.permute.xlu0 %345
        %347 = vrot.lane.b32.xlu0 %v245, 8
        %v348 = vpop.permute.xlu0 %347
        %349 = vrot.lane.b32.xlu0 %v246, 8
        %v350 = vpop.permute.xlu0 %349
        %351 = vrot.lane.b32.xlu0 %v247, 8
        %v352 = vpop.permute.xlu0 %351
        %353 = vrot.lane.b32.xlu0 %v248, 8
        %v354 = vpop.permute.xlu0 %353
        %355 = vrot.lane.b32.xlu0 %v249, 8
        %v356 = vpop.permute.xlu0 %355
        %357 = vrot.lane.b32.xlu0 %v250, 8
        %v358 = vpop.permute.xlu0 %357
        %375 = vrot.lane.b32.xlu0 %v252, 12
        %v376 = vpop.permute.xlu0 %375
        %377 = vrot.lane.b32.xlu0 %v253, 12
        %v378 = vpop.permute.xlu0 %377
        %379 = vrot.lane.b32.xlu0 %v254, 12
        %v380 = vpop.permute.xlu0 %379
        %381 = vrot.lane.b32.xlu0 %v255, 12
        %v382 = vpop.permute.xlu0 %381
        %383 = vrot.lane.b32.xlu0 %v256, 12
        %v384 = vpop.permute.xlu0 %383
        %385 = vrot.lane.b32.xlu0 %v257, 12
        %v386 = vpop.permute.xlu0 %385
        %387 = vrot.lane.b32.xlu0 %v258, 12
        %v388 = vpop.permute.xlu0 %387
        %389 = vrot.lane.b32.xlu0 %v259, 12
        %v390 = vpop.permute.xlu0 %389
        %407 = vrot.lane.b32.xlu0 %v261, 16
        %v408 = vpop.permute.xlu0 %407
        %409 = vrot.lane.b32.xlu0 %v262, 16
        %v410 = vpop.permute.xlu0 %409
        %411 = vrot.lane.b32.xlu0 %v263, 16
        %v412 = vpop.permute.xlu0 %411
        %413 = vrot.lane.b32.xlu0 %v264, 16
        %v414 = vpop.permute.xlu0 %413
        %415 = vrot.lane.b32.xlu0 %v265, 16
        %v416 = vpop.permute.xlu0 %415
        %417 = vrot.lane.b32.xlu0 %v266, 16
        %v418 = vpop.permute.xlu0 %417
        %419 = vrot.lane.b32.xlu0 %v267, 16
        %v420 = vpop.permute.xlu0 %419
        %421 = vrot.lane.b32.xlu0 %v268, 16
        %v422 = vpop.permute.xlu0 %421
        %439 = vrot.lane.b32.xlu0 %v269, 20
        %v440 = vpop.permute.xlu0 %439
        %441 = vrot.lane.b32.xlu0 %v270, 20
        %v442 = vpop.permute.xlu0 %441
        %443 = vrot.lane.b32.xlu0 %v271, 20
        %v444 = vpop.permute.xlu0 %443
        %445 = vrot.lane.b32.xlu0 %v272, 20
        %v446 = vpop.permute.xlu0 %445
        %447 = vrot.lane.b32.xlu0 %v273, 20
        %v448 = vpop.permute.xlu0 %447
        %449 = vrot.lane.b32.xlu0 %v274, 20
        %v450 = vpop.permute.xlu0 %449
        %451 = vrot.lane.b32.xlu0 %v275, 20
        %v452 = vpop.permute.xlu0 %451
        %453 = vrot.lane.b32.xlu0 %v276, 20
        %v454 = vpop.permute.xlu0 %453
        %471 = vrot.lane.b32.xlu0 %v278, 24
        %v472 = vpop.permute.xlu0 %471
        %473 = vrot.lane.b32.xlu0 %v279, 24
        %v474 = vpop.permute.xlu0 %473
        %475 = vrot.lane.b32.xlu0 %v280, 24
        %v476 = vpop.permute.xlu0 %475
        %477 = vrot.lane.b32.xlu0 %v281, 24
        %v478 = vpop.permute.xlu0 %477
        %479 = vrot.lane.b32.xlu0 %v282, 24
        %v480 = vpop.permute.xlu0 %479
        %481 = vrot.lane.b32.xlu0 %v283, 24
        %v482 = vpop.permute.xlu0 %481
        %483 = vrot.lane.b32.xlu0 %v284, 24
        %v484 = vpop.permute.xlu0 %483
        %485 = vrot.lane.b32.xlu0 %v285, 24
        %v486 = vpop.permute.xlu0 %485
        %503 = vrot.lane.b32.xlu0 %v287, 28
        %v504 = vpop.permute.xlu0 %503
        %505 = vrot.lane.b32.xlu0 %v288, 28
        %v506 = vpop.permute.xlu0 %505
        %507 = vrot.lane.b32.xlu0 %v289, 28
        %v508 = vpop.permute.xlu0 %507
        %509 = vrot.lane.b32.xlu0 %v290, 28
        %v510 = vpop.permute.xlu0 %509
        %511 = vrot.lane.b32.xlu0 %v291, 28
        %v512 = vpop.permute.xlu0 %511
        %513 = vrot.lane.b32.xlu0 %v292, 28
        %v514 = vpop.permute.xlu0 %513
        %515 = vrot.lane.b32.xlu0 %v293, 28
        %v516 = vpop.permute.xlu0 %515
        %517 = vrot.lane.b32.xlu0 %v294, 28
        %v518 = vpop.permute.xlu0 %517
        %535 = vrot.lane.b32.xlu0 %v295, 32
        %v536 = vpop.permute.xlu0 %535
        %537 = vrot.lane.b32.xlu0 %v296, 32
        %v538 = vpop.permute.xlu0 %537
        %539 = vrot.lane.b32.xlu0 %v297, 32
        %v540 = vpop.permute.xlu0 %539
        %541 = vrot.lane.b32.xlu0 %v298, 32
        %v542 = vpop.permute.xlu0 %541
        %543 = vrot.lane.b32.xlu0 %v299, 32
        %v544 = vpop.permute.xlu0 %543
        %545 = vrot.lane.b32.xlu0 %v300, 32
        %v546 = vpop.permute.xlu0 %545
        %547 = vrot.lane.b32.xlu0 %v301, 32
        %v548 = vpop.permute.xlu0 %547
        %549 = vrot.lane.b32.xlu0 %v302, 32
        %v550 = vpop.permute.xlu0 %549
        %vm559 = vcmask 31744
        %v560 = vsel %vm559, %v226, %v312
        %v561 = vsel %vm559, %v227, %v314
        %v562 = vsel %vm559, %v228, %v316
        %v563 = vsel %vm559, %v229, %v318
        %v564 = vsel %vm559, %v230, %v320
        %v565 = vsel %vm559, %v231, %v322
        %v566 = vsel %vm559, %v232, %v324
        %v567 = vsel %vm559, %v233, %v326
        %vm568 = vcmask 64512
        %v569 = vsel %vm568, %v560, %v344
        %v570 = vsel %vm568, %v561, %v346
        %v571 = vsel %vm568, %v562, %v348
        %v572 = vsel %vm568, %v563, %v350
        %v573 = vsel %vm568, %v564, %v352
        %v574 = vsel %vm568, %v565, %v354
        %v575 = vsel %vm568, %v566, %v356
        %v576 = vsel %vm568, %v567, %v358
        %vm577 = vcmask 97280
        %v578 = vsel %vm577, %v569, %v376
        %v579 = vsel %vm577, %v570, %v378
        %v580 = vsel %vm577, %v571, %v380
        %v581 = vsel %vm577, %v572, %v382
        %v582 = vsel %vm577, %v573, %v384
        %v583 = vsel %vm577, %v574, %v386
        %v584 = vsel %vm577, %v575, %v388
        %v585 = vsel %vm577, %v576, %v390
        %vm586 = vcmask 130048
        %v587 = vsel %vm586, %v578, %v408
        %v588 = vsel %vm586, %v579, %v410
        %v589 = vsel %vm586, %v580, %v412
        %v590 = vsel %vm586, %v581, %v414
        %v591 = vsel %vm586, %v582, %v416
        %v592 = vsel %vm586, %v583, %v418
        %v593 = vsel %vm586, %v584, %v420
        %v594 = vsel %vm586, %v585, %v422
        %vm595 = vcmask 162816
        %v596 = vsel %vm595, %v587, %v440
        %v597 = vsel %vm595, %v588, %v442
        %v598 = vsel %vm595, %v589, %v444
        %v599 = vsel %vm595, %v590, %v446
        %v600 = vsel %vm595, %v591, %v448
        %v601 = vsel %vm595, %v592, %v450
        %v602 = vsel %vm595, %v593, %v452
        %v603 = vsel %vm595, %v594, %v454
        %vm604 = vcmask 195584
        %v605 = vsel %vm604, %v596, %v472
        %v606 = vsel %vm604, %v597, %v474
        %v607 = vsel %vm604, %v598, %v476
        %v608 = vsel %vm604, %v599, %v478
        %v609 = vsel %vm604, %v600, %v480
        %v610 = vsel %vm604, %v601, %v482
        %v611 = vsel %vm604, %v602, %v484
        %v612 = vsel %vm604, %v603, %v486
        %vm613 = vcmask 228352
        %v614 = vsel %vm613, %v605, %v504
        %v615 = vsel %vm613, %v606, %v506
        %v616 = vsel %vm613, %v607, %v508
        %v617 = vsel %vm613, %v608, %v510
        %v618 = vsel %vm613, %v609, %v512
        %v619 = vsel %vm613, %v610, %v514
        %v620 = vsel %vm613, %v611, %v516
        %v621 = vsel %vm613, %v612, %v518
        %vm622 = vcmask 261120
        %v623 = vsel %vm622, %v614, %v536
        %v624 = vsel %vm622, %v615, %v538
        %v625 = vsel %vm622, %v616, %v540
        %v626 = vsel %vm622, %v617, %v542
        %v627 = vsel %vm622, %v618, %v544
        %v628 = vsel %vm622, %v619, %v546
        %v629 = vsel %vm622, %v620, %v548
        %v630 = vsel %vm622, %v621, %v550
        %vm631 = vcmask 293888
        %632 = vst.msk [vmem:[#allocation2] sm:$0xff] %vm631, %v623
        %633 = vst.msk [vmem:[#allocation2 + $0x8] sm:$0xff] %vm631, %v624
        %634 = vst.msk [vmem:[#allocation2 + $0x10] sm:$0xff] %vm631, %v625
        %635 = vst.msk [vmem:[#allocation2 + $0x18] sm:$0xff] %vm631, %v626
        %636 = vst.msk [vmem:[#allocation2 + $0x20] sm:$0xff] %vm631, %v627
        %637 = vst.msk [vmem:[#allocation2 + $0x28] sm:$0xff] %vm631, %v628
        %638 = vst.msk [vmem:[#allocation2 + $0x30] sm:$0xff] %vm631, %v629
        %639 = vst.msk [vmem:[#allocation2 + $0x38] sm:$0xff] %vm631, %v630
      $region36: #{_lambda_.1} parent=31 // pred_fallthru
        _
      %v640 = vld [vmem:[#allocation2] sm:$0xff]
      %v641 = vld [vmem:[#allocation2 + $0x8] sm:$0xff]
      %v642 = vld [vmem:[#allocation2 + $0x10] sm:$0xff]
      %v643 = vld [vmem:[#allocation2 + $0x18] sm:$0xff]
      %v644 = vld [vmem:[#allocation2 + $0x20] sm:$0xff]
      %v645 = vld [vmem:[#allocation2 + $0x28] sm:$0xff]
      %v646 = vld [vmem:[#allocation2 + $0x30] sm:$0xff]
      %v647 = vld [vmem:[#allocation2 + $0x38] sm:$0xff]
      %v648 = vld [vmem:[%s210] sm:$0xff]
      %v649 = vld [vmem:[%s210 + $0x8] sm:$0xff]
      %v650 = vld [vmem:[%s210 + $0x10] sm:$0xff]
      %v651 = vld [vmem:[%s210 + $0x18] sm:$0xff]
      %v652 = vld [vmem:[%s210 + $0x20] sm:$0xf]
      %v653 = vld [vmem:[%s213] sm:$0x1]
      %v655 = vlaneseq
      %v656 = vshrl.u32 %v655, 7
      %v657 = vsub.s32 0, %v656
      %v658 = vrot.slane %v653, %v657
      %vm660 = vcmask 293888
      %v662 = vsel %vm660, %v640, 0
      %v665 = vsel %vm660, %v641, 0
      %v668 = vsel %vm660, %v642, 0
      %v671 = vsel %vm660, %v643, 0
      %v674 = vsel %vm660, %v644, 0
      %v677 = vsel %vm660, %v645, 0
      %v680 = vsel %vm660, %v646, 0
      %v683 = vsel %vm660, %v647, 0
      %vm685 = vcmask 1043456
      %v687 = vsel %vm685, %v652, 0
      %689 = vmatprep.subr.mxu0 0.0
      %690 = vmatpush1.msra.mxu0 %v648
      %691 = vmatprep.subr.mxu0 0.0
      %692 = vmatpush1.msra.mxu0 %v649
      %693 = vmatprep.subr.mxu0 0.0
      %694 = vmatpush1.msra.mxu0 %v650
      %695 = vmatprep.subr.mxu0 0.0
      %696 = vmatpush1.msra.mxu0 %v651
      %697 = vmatprep.subr.mxu0 0.0
      %698 = vmatpush1.msra.mxu0 %v687
      %699 = vmatprep.subr.mxu0 0.0
      %700 = vmatpush1.msra.mxu0 0.0
      %701 = vmatprep.subr.mxu0 0.0
      %702 = vmatpush1.msra.mxu0 0.0
      %703 = vmatprep.subr.mxu0 0.0
      %704 = vmatpush1.msra.mxu0 0.0
      %705 = vmatprep.subr.mxu0 0.0
      %706 = vmatpush1.msra.mxu0 0.0
      %707 = vmatprep.subr.mxu0 0.0
      %708 = vmatpush1.msra.mxu0 0.0
      %709 = vmatprep.subr.mxu0 0.0
      %710 = vmatpush1.msra.mxu0 0.0
      %711 = vmatprep.subr.mxu0 0.0
      %712 = vmatpush1.msra.mxu0 0.0
      %713 = vmatprep.subr.mxu0 0.0
      %714 = vmatpush1.msra.mxu0 0.0
      %715 = vmatprep.subr.mxu0 0.0
      %716 = vmatpush1.msra.mxu0 0.0
      %717 = vmatprep.subr.mxu0 0.0
      %718 = vmatpush1.msra.mxu0 0.0
      %719 = vmatprep.subr.mxu0 0.0
      %720 = vmatpush1.msra.mxu0 0.0
      %721 = vmatprep.subr.mxu0 0.0
      %722 = vmatpush1.msra.mxu0 0.0
      %723 = vmatprep.subr.mxu0 0.0
      %724 = vmatpush1.msra.mxu0 0.0
      %725 = vmatprep.subr.mxu0 0.0
      %726 = vmatpush1.msra.mxu0 0.0
      %727 = vmatprep.subr.mxu0 0.0
      %728 = vmatpush1.msra.mxu0 0.0
      %729 = vmatprep.subr.mxu0 0.0
      %730 = vmatpush1.msra.mxu0 0.0
      %731 = vmatprep.subr.mxu0 0.0
      %732 = vmatpush1.msra.mxu0 0.0
      %733 = vmatprep.subr.mxu0 0.0
      %734 = vmatpush1.msra.mxu0 0.0
      %735 = vmatprep.subr.mxu0 0.0
      %736 = vmatpush1.msra.mxu0 0.0
      %737 = vmatprep.subr.mxu0 0.0
      %738 = vmatpush1.msra.mxu0 0.0
      %739 = vmatprep.subr.mxu0 0.0
      %740 = vmatpush1.msra.mxu0 0.0
      %741 = vmatprep.subr.mxu0 0.0
      %742 = vmatpush1.msra.mxu0 0.0
      %743 = vmatprep.subr.mxu0 0.0
      %744 = vmatpush1.msra.mxu0 0.0
      %745 = vmatprep.subr.mxu0 0.0
      %746 = vmatpush1.msra.mxu0 0.0
      %747 = vmatprep.subr.mxu0 0.0
      %748 = vmatpush1.msra.mxu0 0.0
      %749 = vmatprep.subr.mxu0 0.0
      %750 = vmatpush1.msra.mxu0 0.0
      %751 = vmatprep.subr.mxu0 0.0
      %752 = vmatpush1.msra.mxu0 0.0
      %753 = vmatprep.mubr.f32.mxu0 0.0
      %754 = vmatmul.mubr.f32.gmra.mrb[0].mxu0 %v662
      %v755 = vpop.f32.mrb[0].mxu0
      %v756 = vadd.f32 %v658, %v755
      %v757 = vpop.f32.mrb[0].mxu0
      %758 = vmatprep.mubr.f32.mxu0 0.0
      %759 = vmatmul.mubr.f32.gmra.mrb[0].mxu0 %v665
      %v760 = vpop.f32.mrb[0].mxu0
      %v761 = vadd.f32 %v658, %v760
      %v762 = vpop.f32.mrb[0].mxu0
      %763 = vmatprep.mubr.f32.mxu0 0.0
      %764 = vmatmul.mubr.f32.gmra.mrb[0].mxu0 %v668
      %v765 = vpop.f32.mrb[0].mxu0
      %v766 = vadd.f32 %v658, %v765
      %v767 = vpop.f32.mrb[0].mxu0
      %768 = vmatprep.mubr.f32.mxu0 0.0
      %769 = vmatmul.mubr.f32.gmra.mrb[0].mxu0 %v671
      %v770 = vpop.f32.mrb[0].mxu0
      %v771 = vadd.f32 %v658, %v770
      %v772 = vpop.f32.mrb[0].mxu0
      %773 = vmatprep.mubr.f32.mxu0 0.0
      %774 = vmatmul.mubr.f32.gmra.mrb[0].mxu0 %v674
      %v775 = vpop.f32.mrb[0].mxu0
      %v776 = vadd.f32 %v658, %v775
      %v777 = vpop.f32.mrb[0].mxu0
      %778 = vmatprep.mubr.f32.mxu0 0.0
      %779 = vmatmul.mubr.f32.gmra.mrb[0].mxu0 %v677
      %v780 = vpop.f32.mrb[0].mxu0
      %v781 = vadd.f32 %v658, %v780
      %v782 = vpop.f32.mrb[0].mxu0
      %783 = vmatprep.mubr.f32.mxu0 0.0
      %784 = vmatmul.mubr.f32.gmra.mrb[0].mxu0 %v680
      %v785 = vpop.f32.mrb[0].mxu0
      %v786 = vadd.f32 %v658, %v785
      %v787 = vpop.f32.mrb[0].mxu0
      %788 = vmatprep.mubr.f32.mxu0 0.0
      %789 = vmatmul.mubr.f32.gmra.mrb[0].mxu0 %v683
      %v790 = vpop.f32.mrb[0].mxu0
      %v791 = vadd.f32 %v658, %v790
      %v792 = vpop.f32.mrb[0].mxu0
      %793 = vdwg.mxu0
      %794 = vst [vmem:[%s221] sm:$0xff] %v756
      %795 = vst [vmem:[%s221 + $0x8] sm:$0xff] %v761
      %796 = vst [vmem:[%s221 + $0x10] sm:$0xff] %v766
      %797 = vst [vmem:[%s221 + $0x18] sm:$0xff] %v771
      %798 = vst [vmem:[%s221 + $0x20] sm:$0xff] %v776
      %799 = vst [vmem:[%s221 + $0x28] sm:$0xff] %v781
      %800 = vst [vmem:[%s221 + $0x30] sm:$0xff] %v786
      %801 = vst [vmem:[%s221 + $0x38] sm:$0xff] %v791
      %p802 = scmp.lt.s32.totalorder %s18, 1
      %s803 = scalar_select %p802, %s18, 1
      %p804 = scmp.lt.s32.totalorder %s19, 0
      %s805 = scalar_select %p804, %s19, 0
      %s806 = smul.addr %s803, 8
      %s807 = sadd.s32 %s805, %s806
      %s808 = smul.addr %s807, 8
      %s809 = scalar_lea.vmem %s3, %s808
      // Predicated region
      $region37: #{_lambda_.1} parent=31 // pred_check
        %p810 = pneg %p124
      $region38: #{_lambda_.1} parent=31 // pred_check_branch
        %812 = sbr.rel (%p810) target = $region40
      $region39: #{_lambda_.1} parent=31 // pred_region
        _
      $region40: #{_lambda_.1} parent=31 // pred_fallthru
        _
    $region32: #{_lambda_.1} parent=5 // pred_fallthru
      _
    %p813 = scmp.le.s32.totalorder 2, %s9
    // Predicated region
    $region41: #{_lambda_.1} parent=5 // pred_check
      %p814 = pneg %p813
    $region42: #{_lambda_.1} parent=5 // pred_check_branch
      %816 = sbr.rel (%p814) target = $region44
    $region43: #{_lambda_.1} parent=5 // pred_region
      %s817 = ssub.s32 %s9, 2
      // Predicated region
      $region45: #{_lambda_.1} parent=43 // pred_check
        %p818 = pneg %p130
      $region46: #{_lambda_.1} parent=43 // pred_check_branch
        %820 = sbr.rel (%p818) target = $region48
      $region47: #{_lambda_.1} parent=43 // pred_region
        %p821 = scmp.lt.s32.totalorder %s20, 1
        %s822 = scalar_select %p821, %s20, 1
        %p823 = scmp.lt.s32.totalorder %s21, 0
        %s824 = scalar_select %p823, %s21, 0
        %s825 = smul.addr %s822, 8
        %s826 = sadd.s32 %s824, %s825
        %s827 = smul.addr %s826, 8
        %s828 = scalar_lea.vmem %s3, %s827
      $region48: #{_lambda_.1} parent=43 // pred_fallthru
        _
    $region44: #{_lambda_.1} parent=5 // pred_fallthru
      _
  $region6: #{_lambda_.1} parent=0 // loop_footer
    %s13 = sadd.s32 1, %s9
  $region7: #{_lambda_.1} parent=0 // loop_footer_branch
    %8 = sbr.rel target = $region3
  $region8: #{_lambda_.1} parent=0 // loop_exit
    _

</llo_original>
